<compile_context>
chip_gen: v7x
topology: tpu7x:2x2x1
jax: 0.10.0
libtpu: 0.0.40
codegen_flags: <defaults>
</compile_context>

<pallas_src>
import functools

import jax
import jax.numpy as jnp
from jax.experimental import pallas as pl
from jax.experimental.pallas import tpu as pltpu


# ---------------------------------------------------------------------------
# Hardware-aware budgets
# ---------------------------------------------------------------------------

@functools.lru_cache(maxsize=None)
def _tpu_budgets():
    """(max_block_bytes, vmem_limit_bytes, prefer_row_split) per generation."""
    vmem_cap = None
    try:
        info = pltpu.get_tpu_info()
        vmem_cap = getattr(info, "vmem_capacity_bytes", None)
    except Exception:
        vmem_cap = None
    if vmem_cap is not None and vmem_cap > 64 * 1024 * 1024:
        # v5e / v6e class: 128 MiB physical VMEM -> bigger blocks, fewer steps.
        return 8 * 1024 * 1024, 64 * 1024 * 1024, False
    # v7x class (64 MiB VMEM) or unknown: stay tight; split rows so both
    # TensorCores stream the mem-bound kernels.
    return 4 * 1024 * 1024, 32 * 1024 * 1024, True


@functools.lru_cache(maxsize=None)
def _has_bf16_vpu():
    try:
        kind = jax.devices()[0].device_kind.lower()
    except Exception:
        return False
    return not any(t in kind for t in ("v2", "v3", "v4", "v5"))


def _compute_dtype(x_dtype):
    if jnp.dtype(x_dtype) == jnp.dtype(jnp.bfloat16) and _has_bf16_vpu():
        return jnp.bfloat16          # v6e/v7x VPU is bf16-capable: skip f32 upcast
    return jnp.float32


# ---------------------------------------------------------------------------
# Tiling helpers
# ---------------------------------------------------------------------------

def _round_down(v, m):
    return (v // m) * m


def _choose_tiles(n_rows, n_cols, itemsize, max_block_bytes, upcast, split_rows):
    """Lane-dense blocks sized near the per-block byte budget."""
    eff = itemsize * (2 if upcast else 1)        # account in-kernel f32 upcast
    sub = 8 * max(1, 4 // max(1, itemsize))      # sublane quantum (8 f32 / 16 bf16)
    max_c = max(128, _round_down(max_block_bytes // (sub * eff), 128))
    if n_cols <= max_c:
        tile_c = n_cols                          # full extent: always legal
    else:
        tile_c = max_c
        if n_cols % 128 == 0:
            t = max_c                            # prefer a divisor (no masked edge)
            while t >= 128:
                if n_cols % t == 0:
                    break
                t -= 128
            if t >= max_c // 2:
                tile_c = t
    max_r = max(sub, _round_down(max_block_bytes // (tile_c * eff), sub))
    tile_r = n_rows if n_rows <= max_r else max_r
    # v7x: ensure the leading 'parallel' axis has >= 2 steps so both
    # TensorCores stream this purely mem-bound kernel.
    if split_rows and tile_r >= n_rows and n_rows >= 2 * sub:
        tile_r = ((pl.cdiv(n_rows, 2) + sub - 1) // sub) * sub
    return tile_r, tile_c


def _stats_hw_tile(hw, c, eff_itemsize, max_block_bytes):
    """Spatial tile for the stats pass; returns (hw_tile, need_mask)."""
    max_lanes = max(128, _round_down(max_block_bytes // max(1, c * eff_itemsize), 128))
    if hw <= max_lanes:
        return hw, False                         # full extent, no mask
    if hw % 128 == 0:
        t = max_lanes
        while t >= 128:                          # prefer a divisor tile: no mask
            if hw % t == 0:
                break
            t -= 128
        if t >= max_lanes // 2:
            return t, False
    return max_lanes, (hw % max_lanes != 0)


# ---------------------------------------------------------------------------
# Kernels
# ---------------------------------------------------------------------------

def _affine_row_kernel(x_ref, p_ref, o_ref):
    """out = mul*x + add; per-row params packed as (tile_r, 2) = [mul, add]."""
    mul = p_ref[:, 0:1]
    add = p_ref[:, 1:2]
    o_ref[...] = (x_ref[...].astype(mul.dtype) * mul + add).astype(o_ref.dtype)


def _affine_col_kernel(x_ref, p_ref, o_ref):
    """out = mul*x + add; per-column params packed as (2, tile_c) = [mul; add]."""
    mul = p_ref[0:1, :]
    add = p_ref[1:2, :]
    o_ref[...] = (x_ref[...].astype(mul.dtype) * mul + add).astype(o_ref.dtype)


def _stats_partial_kernel(x_ref, o_ref, *, hw_total, hw_tile, need_mask):
    """Per-(batch, spatial-tile) partial [sum, sum-of-squares] per channel."""
    x = x_ref[...].astype(jnp.float32)                        # (C, hw_tile)
    if need_mask:                                             # static: aligned case has no mask
        j = pl.program_id(1)
        col = jax.lax.broadcasted_iota(jnp.int32, x.shape, 1)
        x = jnp.where(j * hw_tile + col < hw_total, x, 0.0)
    s = jnp.sum(x, axis=1, keepdims=True)
    ss = jnp.sum(x * x, axis=1, keepdims=True)
    o_ref[...] = jnp.concatenate([s, ss], axis=1)             # (C, 2)


# ---------------------------------------------------------------------------
# Pallas wrappers
# ---------------------------------------------------------------------------

def apply_affine_rows(x2d, params_rows):
    """out = mul*x + add on an (N, M) slab with packed per-row params (N, 2)."""
    N, M = x2d.shape
    max_block_bytes, vmem_limit, split_rows = _tpu_budgets()
    itemsize = jnp.dtype(x2d.dtype).itemsize
    upcast = params_rows.dtype != x2d.dtype
    tile_r, tile_c = _choose_tiles(N, M, itemsize, max_block_bytes, upcast, split_rows)
    grid = (pl.cdiv(N, tile_r), pl.cdiv(M, tile_c))   # cols innermost: param block reused
    return pl.pallas_call(
        _affine_row_kernel,
        out_shape=jax.ShapeDtypeStruct((N, M), x2d.dtype),
        grid=grid,
        in_specs=[pl.BlockSpec((tile_r, tile_c), lambda i, j: (i, j)),
                  pl.BlockSpec((tile_r, 2), lambda i, j: (i, 0))],
        out_specs=pl.BlockSpec((tile_r, tile_c), lambda i, j: (i, j)),
        compiler_params=pltpu.CompilerParams(
            dimension_semantics=("parallel", "parallel"),
            vmem_limit_bytes=vmem_limit),
    )(x2d, params_rows)


def apply_affine_cols(x2d, params_cols):
    """out = mul*x + add on an (N, M) slab with packed per-column params (2, M)."""
    N, M = x2d.shape
    max_block_bytes, vmem_limit, split_rows = _tpu_budgets()
    itemsize = jnp.dtype(x2d.dtype).itemsize
    upcast = params_cols.dtype != x2d.dtype
    tile_r, tile_c = _choose_tiles(N, M, itemsize, max_block_bytes, upcast, split_rows)
    grid = (pl.cdiv(N, tile_r), pl.cdiv(M, tile_c))
    return pl.pallas_call(
        _affine_col_kernel,
        out_shape=jax.ShapeDtypeStruct((N, M), x2d.dtype),
        grid=grid,
        in_specs=[pl.BlockSpec((tile_r, tile_c), lambda i, j: (i, j)),
                  pl.BlockSpec((2, tile_c), lambda i, j: (0, j))],
        out_specs=pl.BlockSpec((tile_r, tile_c), lambda i, j: (i, j)),
        compiler_params=pltpu.CompilerParams(
            dimension_semantics=("parallel", "parallel"),
            vmem_limit_bytes=vmem_limit),
    )(x2d, params_cols)


def compute_stats(x4d):
    """Per-channel loc = -mean, scale = 1/(std_unbiased + 1e-6) over (B, H, W)."""
    B, C, H, W = x4d.shape
    HW = H * W
    x3d = x4d.reshape(B, C, HW)
    max_block_bytes, vmem_limit, _ = _tpu_budgets()
    eff = max(jnp.dtype(x4d.dtype).itemsize, 4)        # kernel math is f32
    hw_tile, need_mask = _stats_hw_tile(HW, C, eff, max_block_bytes)
    nJ = pl.cdiv(HW, hw_tile)

    # Fully parallel grid emitting disjoint per-(b, j) partial moments:
    # no shared VMEM/SMEM scratch, no serial carry -> megacore-safe.
    partials = pl.pallas_call(
        functools.partial(_stats_partial_kernel,
                          hw_total=HW, hw_tile=hw_tile, need_mask=need_mask),
        out_shape=jax.ShapeDtypeStruct((B * nJ, C, 2), jnp.float32),
        grid=(B, nJ),
        in_specs=[pl.BlockSpec((None, C, hw_tile), lambda b, j: (b, 0, j))],
        out_specs=pl.BlockSpec((None, C, 2), lambda b, j: (b * nJ + j, 0, 0)),
        compiler_params=pltpu.CompilerParams(
            dimension_semantics=("parallel", "parallel"),
            vmem_limit_bytes=vmem_limit),
    )(x3d)

    tot = jnp.sum(partials, axis=0)                    # (C, 2): tiny jnp finish
    n = float(B * HW)
    mean = tot[:, 0] / n
    # TODO(synk): n == 1 yields NaN in torch's unbiased std; we clamp the
    # denominator (and negative cancellation residue) instead of reproducing it.
    var = jnp.maximum((tot[:, 1] - n * mean * mean) / max(n - 1.0, 1.0), 0.0)
    std = jnp.sqrt(var)
    return -mean, 1.0 / (std + 1e-6)


# ---------------------------------------------------------------------------
# ActNorm module (plain-Python state container; compute is in Pallas kernels)
# ---------------------------------------------------------------------------

class ActNorm:
    # TODO(synk): `initialized` / loc / scale are Python-side mutable state, so
    # the data-dependent init is not jit/trace-safe (same limitation as the
    # stateful nn.Module); the kernels themselves are pure.
    def __init__(self, num_features, logdet=False, affine=True,
                 allow_reverse_init=False):
        assert affine, "This implementation only supports affine ActNorm."
        self.num_features = num_features
        self.logdet = logdet
        self.allow_reverse_init = allow_reverse_init
        self.initialized = False
        # Parameters stored per-channel as (C,) f32: loc = 0, scale = 1.
        self.loc = jnp.zeros((num_features,), jnp.float32)
        self.scale = jnp.ones((num_features,), jnp.float32)

    def initialize(self, x4d):
        loc, scale = compute_stats(x4d)
        self.loc, self.scale = loc, scale

    def __call__(self, x, reverse=False):
        squeeze = x.ndim == 2
        x4 = x[:, :, None, None] if squeeze else x
        B, C, H, W = x4.shape

        if not self.initialized:
            if reverse and not self.allow_reverse_init:
                raise RuntimeError(
                    "Initializing ActNorm in reverse direction is disabled by "
                    "default. Use allow_reverse_init=True to enable.")
            self.initialize(x4)
            self.initialized = True

        # Fold both directions into a single fused multiply-add:
        #   forward: scale*(x + loc)  == scale*x + scale*loc
        #   reverse: x/scale - loc    == (1/scale)*x + (-loc)
        if reverse:
            mul32 = (1.0 / self.scale).astype(jnp.float32)
            add32 = (-self.loc).astype(jnp.float32)
        else:
            mul32 = self.scale.astype(jnp.float32)
            add32 = (self.scale * self.loc).astype(jnp.float32)

        cdtype = _compute_dtype(x.dtype)
        HW = H * W

        if squeeze and C < 128:
            # TODO(synk): lane-sparse (<128 lanes) tiny slab — kernel launch and
            # masked-store overhead dominates, so this path stays in plain XLA.
            out = (x.astype(jnp.float32) * mul32[None, :]
                   + add32[None, :]).astype(x.dtype)
        elif squeeze:
            p = jnp.stack([mul32, add32], axis=0).astype(cdtype)        # (2, C)
            out = apply_affine_cols(x, p)
        elif HW % 128 == 0:
            # NCHW -> (B*C, HW) contiguous reshape (no transpose); lane-dense
            # rows, per-row [mul, add] packed into a single (B*C, 2) stream.
            x2d = x4.reshape(B * C, HW)
            p = jnp.stack([jnp.tile(mul32, B), jnp.tile(add32, B)],
                          axis=1).astype(cdtype)                        # (B*C, 2)
            out = apply_affine_rows(x2d, p).reshape(B, C, H, W)
        else:
            # Unaligned HW: flatten channel+spatial onto the lane axis so the
            # output stays lane-dense; per-column params repeated per channel.
            x2d = x4.reshape(B, C * HW)
            p = jnp.stack([jnp.repeat(mul32, HW), jnp.repeat(add32, HW)],
                          axis=0).astype(cdtype)                        # (2, C*HW)
            out = apply_affine_cols(x2d, p).reshape(B, C, H, W)
            if squeeze:
                out = out.reshape(B, C)

        if self.logdet and not reverse:
            # (C,) reduction: plain jnp, no extra kernel launch needed.
            log_abs_sum = jnp.sum(jnp.log(jnp.abs(self.scale)))
            logdet = (H * W) * log_abs_sum
            return out, logdet * jnp.ones((B,), x.dtype)
        return out


# ---------------------------------------------------------------------------
# Pure-JAX reference for verification
# ---------------------------------------------------------------------------

def actnorm_reference(x, logdet=True):
    mean = jnp.mean(x, axis=(0, 2, 3), keepdims=True)
    std = jnp.std(x, axis=(0, 2, 3), keepdims=True, ddof=1)
    loc = -mean
    scale = 1.0 / (std + 1e-6)
    out = scale * (x + loc)
    if logdet:
        ld = x.shape[2] * x.shape[3] * jnp.sum(jnp.log(jnp.abs(scale)))
        return out, ld * jnp.ones((x.shape[0],), x.dtype)
    return out


if __name__ == "__main__":
    key = jax.random.PRNGKey(0)
    B, C, H, W = 2, 4, 16, 16
    x = jax.random.normal(key, (B, C, H, W), dtype=jnp.float32) * 1.7 + 0.3

    actnorm = ActNorm(C, logdet=True)

    out, logdet = actnorm(x)                 # first call also initializes loc/scale
    out = jax.block_until_ready(out)
    logdet = jax.block_until_ready(logdet)

    ref_out, ref_logdet = actnorm_reference(x, logdet=True)
    assert jnp.allclose(out, ref_out, atol=1e-4, rtol=1e-4), "forward mismatch"
    assert jnp.allclose(logdet, ref_logdet, atol=1e-4, rtol=1e-4), "logdet mismatch"

    # reverse direction should invert the forward transform
    rec = jax.block_until_ready(actnorm(out, reverse=True))
    assert jnp.allclose(rec, x, atol=1e-4, rtol=1e-4), "reverse mismatch"

    # 2D input path (module unsqueezes / squeezes); params already initialized.
    x2 = jax.random.normal(jax.random.PRNGKey(1), (8, C), dtype=jnp.float32)
    out2, _ = actnorm(x2)
    out2 = jax.block_until_ready(out2)
    ref2 = actnorm.scale[None, :] * (x2 + actnorm.loc[None, :])
    assert jnp.allclose(out2, ref2, atol=1e-4, rtol=1e-4), "2d forward mismatch"

    # Non-128-aligned spatial extent exercises the column-param layout.
    actnorm2 = ActNorm(C, logdet=False)
    x3 = jax.random.normal(jax.random.PRNGKey(2), (2, C, 10, 10),
                           dtype=jnp.float32) * 0.5 - 1.0
    out3 = jax.block_until_ready(actnorm2(x3))
    mean3 = jnp.mean(x3, axis=(0, 2, 3))
    std3 = jnp.std(x3, axis=(0, 2, 3), ddof=1)
    ref3 = ((1.0 / (std3 + 1e-6))[None, :, None, None]
            * (x3 - mean3[None, :, None, None]))
    assert jnp.allclose(out3, ref3, atol=1e-4, rtol=1e-4), "unaligned-HW mismatch"

    print("KERNEL_OK")
</pallas_src>

<mosaic_0001>
module attributes {stable_mosaic.version = 11 : i64} {
  func.func @_stats_partial_kernel(%arg0: i32, %arg1: i32, %arg2: memref<1x4x256xf32, #tpu.memory_space<vmem>>, %arg3: memref<1x4x2xf32, #tpu.memory_space<vmem>>) attributes {dimension_semantics = [#tpu.dimension_semantics<parallel>, #tpu.dimension_semantics<parallel>], iteration_bounds = array<i64: 2, 1>, scalar_prefetch = 0 : i64, scratch_operands = 0 : i64, tpu.core_type = #tpu.core_type<tc>, window_params = [{transform_indices = @transform_0, window_bounds = array<i64: 1, 4, 256>}, {transform_indices = @transform_1, window_bounds = array<i64: 1, 4, 2>}]} {
    %c0 = arith.constant 0 : index
    %c0_0 = arith.constant 0 : index
    %c0_1 = arith.constant 0 : index
    %0 = vector.load %arg2[%c0, %c0_0, %c0_1] : memref<1x4x256xf32, #tpu.memory_space<vmem>>, vector<1x4x256xf32>
    %1 = vector.shape_cast %0 : vector<1x4x256xf32> to vector<4x256xf32>
    %cst = arith.constant dense<0.000000e+00> : vector<4xf32>
    %2 = vector.multi_reduction <add>, %1, %cst [1] : vector<4x256xf32> to vector<4xf32>
    %3 = vector.shape_cast %2 : vector<4xf32> to vector<4x1xf32>
    %4 = arith.mulf %1, %1 : vector<4x256xf32>
    %cst_2 = arith.constant dense<0.000000e+00> : vector<4xf32>
    %5 = vector.multi_reduction <add>, %4, %cst_2 [1] : vector<4x256xf32> to vector<4xf32>
    %6 = vector.shape_cast %5 : vector<4xf32> to vector<4x1xf32>
    %7 = tpu.concatenate %3, %6 in 1 : vector<4x1xf32>, vector<4x1xf32> -> vector<4x2xf32>
    %c0_3 = arith.constant 0 : index
    %c0_4 = arith.constant 0 : index
    %c0_5 = arith.constant 0 : index
    %8 = vector.load %arg3[%c0_3, %c0_4, %c0_5] : memref<1x4x2xf32, #tpu.memory_space<vmem>>, vector<1x4x2xf32>
    %9 = vector.shape_cast %8 : vector<1x4x2xf32> to vector<4x2xf32>
    %10 = vector.shape_cast %7 : vector<4x2xf32> to vector<1x4x2xf32>
    tpu.vector_store %arg3[%c0_3, %c0_4, %c0_5], %10 {strides = array<i32>} : memref<1x4x2xf32, #tpu.memory_space<vmem>>, vector<1x4x2xf32>,
    return
  }
  func.func @transform_0(%arg0: i32, %arg1: i32) -> (i32, i32, i32) {
    %c0_i32 = arith.constant 0 : i32
    %c0_i32_0 = arith.constant 0 : i32
    return %arg0, %c0_i32, %arg1 : i32, i32, i32
  }
  func.func @transform_1(%arg0: i32, %arg1: i32) -> (i32, i32, i32) {
    %c1_i32 = arith.constant 1 : i32
    %0 = arith.muli %arg0, %c1_i32 : i32
    %1 = arith.addi %0, %arg1 : i32
    %c0_i32 = arith.constant 0 : i32
    %c0_i32_0 = arith.constant 0 : i32
    %c0_i32_1 = arith.constant 0 : i32
    return %1, %c0_i32, %c0_i32_0 : i32, i32, i32
  }
}

</mosaic_0001>

<llo_original>
// kernel: tpu_custom_call.1
$region0: #{tpu_custom_call.1}
  #allocation0 [shape = 'u32[]', space=smem, size = 0x4, offset = 0x4, fixed_abs, tag = 'smem constant byte address 0x4 - core index']
  #allocation1 [shape = 'u32[144,128]{1,0:T(1,128)}', space=vmem, size = 0x12000, scoped, tag = 'internal scratch']
  %s0 = inlined_call_operand.hbm [shape: f32[2,4,256], index: 0, kind: input, shape index: {}]
  %s1 = inlined_call_operand.vmem [shape: f32[2,4,2], index: 1, kind: output, shape index: {}]
  %s2 = sld [smem:[#allocation0]]
  $region41: #{tpu_custom_call.1} parent=0
    _
  %s4 = ssub.s32 1, %s2
  %s5 = scalar_select 0, %s4, %s2
  $region1: #{tpu_custom_call.1} parent=0
    #allocation2 [shape = 'u8[8192]{0}', space=vmem, size = 0x2000, scoped, tag = 'input window, operand 0']
    #allocation3 [shape = 's32[2]{0}', space=sflag, size = 0x8, scoped, tag = 'scoped memory for tpu_custom_call.1']
    %6 = vsyncpa [#allocation3], 0
    %s7 = scalar_lea.sflag [#allocation3], 1
    %8 = vsyncpa %s7, 0
    loop: start=0, step=1, limit=4
    $region2: #{tpu_custom_call.1} parent=1 // loop_pre_header
      _
    $region3: #{tpu_custom_call.1} parent=1 // loop_header
      %s10 = sphi 0, %s14
      %p11 = scmp.ge.s32.totalorder %s10, 4
      %s17 = sphi 0, %s29
      %s18 = sphi 0, %s25
      %s19 = sphi 0, %s17
      %s20 = sphi 0, %s18
      %s21 = sphi 0, %s19
      %s22 = sphi 0, %s20
      %s34 = sphi 0, %s36
      %s37 = sphi 0, %s34
      %s38 = sphi 0, %s37
      %s54 = sphi 0, %s38
      %s62 = sphi 0, %s64
      %s65 = sphi 0, %s62
      %s66 = sphi 0, %s65
      %s82 = sphi 0, %s66
    $region4: #{tpu_custom_call.1} parent=1 // loop_header_branch
      %13 = sbr.rel (%p11) target = $region8
    $region5: #{tpu_custom_call.1} parent=1 // loop_body
      %s15 = ssub.s32 %s10, 1
      %s16 = ssub.s32 %s10, 2
      %s23 = sadd.s32 1, %s18
      %p24 = scmp.ge.s32.totalorder %s23, 1
      %s25 = scalar_select %p24, 0, %s23
      %s26 = sadd.s32 1, %s17
      %s27 = scalar_select %p24, %s26, %s17
      %p28 = scmp.ge.s32.totalorder %s27, 2
      %s29 = scalar_select %p28, 0, %s27
      %s30 = ssub.s32 %s17, %s29
      %s31 = ssub.s32 %s18, %s25
      %s32 = sor.u32 %s30, %s31
      %p33 = scmp.eq.s32.totalorder %s32, 0
      %s35 = sadd.s32 %s34, 1
      %s36 = scalar_select %p33, %s34, %s35
      %p39 = pneg %p33
      %p40 = scmp.eq.s32.totalorder %s10, 1
      %p41 = por %p39, %p40
      %p42 = scmp.ne.s32.totalorder %s34, %s37
      %p43 = scmp.eq.s32.totalorder %s10, 0
      %p44 = por %p42, %p43
      %p45 = scmp.ne.s32.totalorder %s34, %s37
      %p46 = scmp.eq.s32.totalorder %s15, 1
      %p47 = por %p45, %p46
      %p48 = scmp.ne.s32.totalorder %s37, %s38
      %p49 = scmp.eq.s32.totalorder %s15, 0
      %p50 = por %p48, %p49
      %p51 = scmp.ne.s32.totalorder %s37, %s38
      %p52 = scmp.eq.s32.totalorder %s16, 1
      %p53 = por %p51, %p52
      %p55 = scmp.ne.s32.totalorder %s38, %s54
      %p56 = scmp.eq.s32.totalorder %s16, 0
      %p57 = por %p55, %p56
      %s58 = sadd.s32 %s17, %s18
      %s59 = sadd.s32 %s29, %s25
      %s60 = ssub.s32 %s58, %s59
      %p61 = scmp.eq.s32.totalorder %s60, 0
      %s63 = sadd.s32 %s62, 1
      %s64 = scalar_select %p61, %s62, %s63
      %p67 = pneg %p61
      %p68 = scmp.eq.s32.totalorder %s10, 1
      %p69 = por %p67, %p68
      %p70 = scmp.ne.s32.totalorder %s62, %s65
      %p71 = scmp.eq.s32.totalorder %s10, 0
      %p72 = por %p70, %p71
      %p73 = scmp.ne.s32.totalorder %s62, %s65
      %p74 = scmp.eq.s32.totalorder %s15, 1
      %p75 = por %p73, %p74
      %p76 = scmp.ne.s32.totalorder %s65, %s66
      %p77 = scmp.eq.s32.totalorder %s15, 0
      %p78 = por %p76, %p77
      %p79 = scmp.ne.s32.totalorder %s65, %s66
      %p80 = scmp.eq.s32.totalorder %s16, 1
      %p81 = por %p79, %p80
      %p83 = scmp.ne.s32.totalorder %s66, %s82
      %p84 = scmp.eq.s32.totalorder %s16, 0
      %p85 = por %p83, %p84
      %p86 = scmp.le.s32.totalorder 1, %s10
      %p87 = scmp.lt.s32.totalorder %s10, 3
      %p88 = pnand %p86, %p87
      %p89 = pneg %p88
      // Predicated region
      $region9: #{tpu_custom_call.1} parent=5 // pred_check
        _
      $region10: #{tpu_custom_call.1} parent=5 // pred_check_branch
        %91 = sbr.rel (%p88) target = $region12
      $region11: #{tpu_custom_call.1} parent=5 // pred_region
        %s92 = ssub.s32 %s10, 1
      $region12: #{tpu_custom_call.1} parent=5 // pred_fallthru
        _
      %p93 = scmp.lt.s32.totalorder %s10, 2
      // Predicated region
      $region13: #{tpu_custom_call.1} parent=5 // pred_check
        %p94 = pneg %p93
      $region14: #{tpu_custom_call.1} parent=5 // pred_check_branch
        %96 = sbr.rel (%p94) target = $region16
      $region15: #{tpu_custom_call.1} parent=5 // pred_region
        // Predicated region
        $region17: #{tpu_custom_call.1} parent=15 // pred_check
          %p97 = pneg %p44
        $region18: #{tpu_custom_call.1} parent=15 // pred_check_branch
          %99 = sbr.rel (%p97) target = $region20
        $region19: #{tpu_custom_call.1} parent=15 // pred_region
          %s100 = sand.u32 %s34, 1
          %s101 = scalar_lea.sflag [#allocation3], %s100
          %s102 = sand.u32 %s34, 1
          %s103 = smul.addr %s102, 8
          %s104 = scalar_lea.vmem [#allocation2], %s103
          %s105 = smul.u32 2, %s18
          %s107 = ssub.s32 128, 128
          %108 = vsyncadd %s101, %s107
          %s109 = smul.addr %s17, 2
          %s110 = sadd.s32 %s105, %s109
          %s111 = smul.addr %s110, 64
          %s112 = scalar_lea.hbm %s0, %s111
          %s114 = sshll.u32 %s104, 4
          %s115 = int_to_ptr.vmem [resolvable:$true] %s114
          %117 = dma.hbm_to_vmem [thread:$0]  %s112, 128, %s115, %s101
        $region20: #{tpu_custom_call.1} parent=15 // pred_fallthru
          _
      $region16: #{tpu_custom_call.1} parent=5 // pred_fallthru
        _
      %p118 = scmp.le.s32.totalorder 1, %s10
      %p119 = scmp.lt.s32.totalorder %s10, 3
      %p120 = pnand %p118, %p119
      %p121 = pneg %p120
      // Predicated region
      $region21: #{tpu_custom_call.1} parent=5 // pred_check
        _
      $region22: #{tpu_custom_call.1} parent=5 // pred_check_branch
        %123 = sbr.rel (%p120) target = $region24
      $region23: #{tpu_custom_call.1} parent=5 // pred_region
        %s124 = ssub.s32 %s10, 1
        %s125 = sand.u32 %s37, 1
        %s126 = scalar_lea.sflag [#allocation3], %s125
        %s127 = sand.u32 %s37, 1
        %s128 = smul.addr %s127, 8
        %s129 = scalar_lea.vmem [#allocation2], %s128
        // Predicated region
        $region25: #{tpu_custom_call.1} parent=23 // pred_check
          %p130 = pneg %p50
        $region26: #{tpu_custom_call.1} parent=23 // pred_check_branch
          %132 = sbr.rel (%p130) target = $region28
        $region27: #{tpu_custom_call.1} parent=23 // pred_region
          %133 = dma.done %s126, 128
        $region28: #{tpu_custom_call.1} parent=23 // pred_fallthru
          _
        %s134 = sand.u32 %s37, 1
        %s135 = scalar_lea.sflag [#allocation3], %s134
        %s136 = sand.u32 %s37, 1
        %s137 = smul.addr %s136, 8
        %s138 = scalar_lea.vmem [#allocation2], %s137
        %p139 = pneg %p50
        %p140 = pneg %p47
        %p141 = pneg %p78
        %p142 = pneg %p75
        %s143 = sadd.s32 %s19, %s20
        %p144 = scmp.lt.s32.totalorder %s143, 1
        %s145 = scalar_select %p144, %s143, 1
        %s146 = smul.addr %s145, 4
        %s147 = scalar_lea.vmem %s1, %s146
        %s148 = smul.u32 2, %s20
        %s149 = sadd.s32 %s19, %s20
        %p150 = scmp.lt.s32.totalorder %s149, 1
        %s151 = scalar_select %p150, %s149, 1
        %s152 = smul.addr %s151, 4
        %s153 = scalar_lea.vmem %s1, %s152
        %s154 = sadd.s32 %s19, %s20
        %v155 = vld [vmem:[%s129] sm:$0xff]
        %v157 = vcombine.high %v155, %v155
        %vm159 = vcmask 1043456
        %v160 = vsel %vm159, %v155, 0.0
        %v161 = vsel %vm159, %v157, 0.0
        %v162 = vadd.f32 %v160, %v161
        %163 = vadd.xlane.f32.xlu0 %v162
        %v164 = vpop.xlane.xlu0 %163
        %v165 = vmul.f32 %v155, %v155
        %v167 = vcombine.high %v165, %v165
        %v169 = vsel %vm159, %v165, 0.0
        %v170 = vsel %vm159, %v167, 0.0
        %v171 = vadd.f32 %v169, %v170
        %172 = vadd.xlane.f32.xlu0 %v171
        %v173 = vpop.xlane.xlu0 %172
        %vm174 = vcmask 7168
        %v175 = vsel %vm174, %v164, %v173
        %vm176 = vcmask 11264
        %177 = vst.msk [vmem:[%s153] sm:$0xf] %vm176, %v175
        %s178 = sadd.s32 %s19, %s20
        %p179 = scmp.lt.s32.totalorder %s178, 1
        %s180 = scalar_select %p179, %s178, 1
        %s181 = smul.addr %s180, 4
        %s182 = scalar_lea.vmem %s1, %s181
        // Predicated region
        $region29: #{tpu_custom_call.1} parent=23 // pred_check
          %p183 = pneg %p75
        $region30: #{tpu_custom_call.1} parent=23 // pred_check_branch
          %185 = sbr.rel (%p183) target = $region32
        $region31: #{tpu_custom_call.1} parent=23 // pred_region
          %s186 = sadd.s32 %s19, %s20
        $region32: #{tpu_custom_call.1} parent=23 // pred_fallthru
          _
      $region24: #{tpu_custom_call.1} parent=5 // pred_fallthru
        _
      %p187 = scmp.le.s32.totalorder 2, %s10
      // Predicated region
      $region33: #{tpu_custom_call.1} parent=5 // pred_check
        %p188 = pneg %p187
      $region34: #{tpu_custom_call.1} parent=5 // pred_check_branch
        %190 = sbr.rel (%p188) target = $region36
      $region35: #{tpu_custom_call.1} parent=5 // pred_region
        %s191 = ssub.s32 %s10, 2
        // Predicated region
        $region37: #{tpu_custom_call.1} parent=35 // pred_check
          %p192 = pneg %p81
        $region38: #{tpu_custom_call.1} parent=35 // pred_check_branch
          %194 = sbr.rel (%p192) target = $region40
        $region39: #{tpu_custom_call.1} parent=35 // pred_region
          %s195 = sadd.s32 %s21, %s22
          %p196 = scmp.lt.s32.totalorder %s195, 1
          %s197 = scalar_select %p196, %s195, 1
          %s198 = smul.addr %s197, 4
          %s199 = scalar_lea.vmem %s1, %s198
        $region40: #{tpu_custom_call.1} parent=35 // pred_fallthru
          _
      $region36: #{tpu_custom_call.1} parent=5 // pred_fallthru
        _
    $region6: #{tpu_custom_call.1} parent=1 // loop_footer
      %s14 = sadd.s32 1, %s10
    $region7: #{tpu_custom_call.1} parent=1 // loop_footer_branch
      %9 = sbr.rel target = $region3
    $region8: #{tpu_custom_call.1} parent=1 // loop_exit
      _
    %200 = vsyncpa [#allocation3], 1
    %s201 = scalar_lea.sflag [#allocation3], 1
    %202 = vsyncpa %s201, 1

</llo_original>
